<compile_context>
chip_gen: v5e
topology: v5e:2x2
jax: 0.10.0
libtpu: 0.0.40
codegen_flags: <defaults>
</compile_context>

<pallas_src>
import jax
import jax.numpy as jnp
from jax.experimental import pallas as pl
from jax.experimental.pallas import tpu as pltpu


_LANE = 128
_TILE_M_MAX = 1024   # rows per grid step; ~5 MiB VMEM incl. double buffers at d_in=256


def _round_up(n, m):
    return (n + m - 1) // m * m


def _choose_tile_m(M):
    """Row-tile size: multiple of 16 (bf16 sublane packing), <= _TILE_M_MAX,
    derived from M so row padding stays small, and >=2 grid steps whenever M is
    big enough to split (lets ("parallel",) use both v7x TensorCores)."""
    if M <= 16:
        return 16
    n_tiles = pl.cdiv(M, _TILE_M_MAX)
    if n_tiles < 2 and M >= 32:
        n_tiles = 2
    return min(_TILE_M_MAX, _round_up(pl.cdiv(M, n_tiles), 16))


def _make_mlp_kernel(n_streams):
    """Fused 3-layer MLP applied to n_streams row tiles with SHARED weights.

    relu(relu(x@W1+b1)@W2+b2)@W3+b3; bf16 MXU operands, f32 accumulation,
    f32 bias+ReLU epilogues, bf16 store.
    """
    def kernel(*refs):
        x_refs = refs[:n_streams]
        w1_ref, b1_ref, w2_ref, b2_ref, w3_ref, b3_ref = refs[n_streams:n_streams + 6]
        o_refs = refs[n_streams + 6:]

        w1 = w1_ref[...]
        w2 = w2_ref[...]
        w3 = w3_ref[...]
        b1 = b1_ref[...]
        b2 = b2_ref[...]
        b3 = b3_ref[...]

        for x_ref, o_ref in zip(x_refs, o_refs):
            # f32 arrives over the DMA; cast to bf16 in-kernel (VPU cast is
            # hidden under the DMA, avoids a separate wrapper convert pass).
            x = x_ref[...].astype(jnp.bfloat16)
            h1 = jnp.dot(x, w1, preferred_element_type=jnp.float32)
            h1 = jnp.maximum(h1 + b1, 0.0)
            h2 = jnp.dot(h1.astype(jnp.bfloat16), w2,
                         preferred_element_type=jnp.float32)
            h2 = jnp.maximum(h2 + b2, 0.0)
            out = jnp.dot(h2.astype(jnp.bfloat16), w3,
                          preferred_element_type=jnp.float32)
            o_ref[...] = (out + b3).astype(o_ref.dtype)

    return kernel


def _embed_streams(xs, params):
    """Apply the shared embedding MLP to each (M, d_in) f32 array in `xs`
    (all same shape) with ONE pallas_call; weights are loaded once."""
    xs = tuple(xs)
    n = len(xs)
    w1, b1, w2, b2, w3, b3 = params
    M, d_in = xs[0].shape
    h1_dim, h2_dim, e = w1.shape[1], w2.shape[1], w3.shape[1]

    # Weights as bf16 MXU operands (tiny, one-off); biases stay f32.
    w1b = w1.astype(jnp.bfloat16)
    w2b = w2.astype(jnp.bfloat16)
    w3b = w3.astype(jnp.bfloat16)

    # Lane-dense bf16 output: pad E to a multiple of 128 (unmasked vst);
    # padded weight/bias columns are zero and get sliced off below.
    e_pad = _round_up(e, _LANE)
    if e_pad != e:
        w3b = jnp.pad(w3b, ((0, 0), (0, e_pad - e)))
        b3 = jnp.pad(b3, ((0, 0), (0, e_pad - e)))

    tile_m = _choose_tile_m(M)
    m_pad = _round_up(M, tile_m)
    if m_pad != M:
        xs = tuple(jnp.pad(x, ((0, m_pad - M), (0, 0))) for x in xs)

    grid = (m_pad // tile_m,)

    row_spec = pl.BlockSpec((tile_m, d_in), lambda i: (i, 0))
    out_spec = pl.BlockSpec((tile_m, e_pad), lambda i: (i, 0))

    def const_spec(shape):
        # Block index never changes -> weights stay resident in VMEM.
        # (If d_in grows large, add a K grid axis + single-buffered weights.)
        return pl.BlockSpec(shape, lambda i: (0, 0))

    flops = 2 * n * m_pad * (d_in * h1_dim + h1_dim * h2_dim + h2_dim * e_pad)
    bytes_accessed = (
        n * m_pad * d_in * 4            # f32 activation reads
        + n * m_pad * e_pad * 2         # bf16 output writes
        + (w1b.size + w2b.size + w3b.size) * 2
        + (b1.size + b2.size + b3.size) * 4
    )

    outs = pl.pallas_call(
        _make_mlp_kernel(n),
        out_shape=tuple(jax.ShapeDtypeStruct((m_pad, e_pad), jnp.bfloat16)
                        for _ in range(n)),
        grid=grid,
        in_specs=[row_spec] * n + [
            const_spec(w1b.shape), const_spec(b1.shape),
            const_spec(w2b.shape), const_spec(b2.shape),
            const_spec(w3b.shape), const_spec(b3.shape),
        ],
        out_specs=tuple(out_spec for _ in range(n)),
        compiler_params=pltpu.CompilerParams(
            dimension_semantics=("parallel",),   # shard row tiles across TCs
        ),
        cost_estimate=pl.CostEstimate(
            flops=flops, transcendentals=0, bytes_accessed=bytes_accessed),
    )(*xs, w1b, b1, w2b, b2, w3b, b3)

    if not isinstance(outs, (list, tuple)):
        outs = (outs,)

    # Slice off padding + cast to f32 for parity with the PyTorch module
    # (tiny (M, e) pass; bf16 consumers can take the padded buffer directly).
    return tuple(o[:M, :e].astype(jnp.float32) for o in outs)


def siamese_forward(x1, x2, params):
    """SiameseNet.forward: (f(x1), f(x2)) with shared weights, one pallas_call,
    no stacked-copy concatenation of the twins."""
    B = x1.shape[0]
    o1, o2 = _embed_streams((x1.reshape(B, -1), x2.reshape(B, -1)), params)
    return o1, o2


def get_embedding(x, params):
    """SiameseNet.get_embedding."""
    (o,) = _embed_streams((x.reshape(x.shape[0], -1),), params)
    return o


def init_params(key, d_in, h1, h2, d_out):
    k1, k2, k3 = jax.random.split(key, 3)
    w1 = jax.random.normal(k1, (d_in, h1), jnp.float32) * (1.0 / jnp.sqrt(d_in))
    b1 = jnp.zeros((1, h1), jnp.float32)
    w2 = jax.random.normal(k2, (h1, h2), jnp.float32) * (1.0 / jnp.sqrt(h1))
    b2 = jnp.zeros((1, h2), jnp.float32)
    w3 = jax.random.normal(k3, (h2, d_out), jnp.float32) * (1.0 / jnp.sqrt(h2))
    b3 = jnp.zeros((1, d_out), jnp.float32)
    return (w1, b1, w2, b2, w3, b3)


def _reference_embedding(x_flat, params):
    """Pure-JAX reference using the same bf16-operand / f32-accumulate recipe.
    (Kernel additionally rounds its output to bf16; tests use loose tolerance.)"""
    w1, b1, w2, b2, w3, b3 = params
    xb = x_flat.astype(jnp.bfloat16)
    h1 = jnp.dot(xb, w1.astype(jnp.bfloat16),
                 preferred_element_type=jnp.float32) + b1
    h1 = jnp.maximum(h1, 0.0)
    h2 = jnp.dot(h1.astype(jnp.bfloat16), w2.astype(jnp.bfloat16),
                 preferred_element_type=jnp.float32) + b2
    h2 = jnp.maximum(h2, 0.0)
    return jnp.dot(h2.astype(jnp.bfloat16), w3.astype(jnp.bfloat16),
                   preferred_element_type=jnp.float32) + b3


if __name__ == "__main__":
    # Small shapes consistent with an NCHW-image Siamese setup.
    B, C, H, W = 2, 1, 16, 16          # x1, x2: [2, 1, 16, 16]
    D_IN = C * H * W                   # 256
    H1, H2, E = 128, 64, 32            # embedding MLP dims

    key = jax.random.PRNGKey(0)
    kx1, kx2, kp, kb = jax.random.split(key, 4)
    x1 = jax.random.normal(kx1, (B, C, H, W), jnp.float32)
    x2 = jax.random.normal(kx2, (B, C, H, W), jnp.float32)
    params = init_params(kp, D_IN, H1, H2, E)

    fwd = jax.jit(siamese_forward)
    out1, out2 = jax.block_until_ready(fwd(x1, x2, params))

    ref1 = _reference_embedding(x1.reshape(B, -1), params)
    ref2 = _reference_embedding(x2.reshape(B, -1), params)
    assert out1.shape == (B, E) and out2.shape == (B, E)
    assert jnp.allclose(out1, ref1, atol=2e-2, rtol=2e-2)
    assert jnp.allclose(out2, ref2, atol=2e-2, rtol=2e-2)

    # Exercise the multi-tile / row-padding path (grid=(2,)) via get_embedding.
    BB = 48
    xb_big = jax.random.normal(kb, (BB, C, H, W), jnp.float32)
    emb = jax.block_until_ready(jax.jit(get_embedding)(xb_big, params))
    ref_big = _reference_embedding(xb_big.reshape(BB, -1), params)
    assert emb.shape == (BB, E)
    assert jnp.allclose(emb, ref_big, atol=2e-2, rtol=2e-2)

    print("KERNEL_OK")
</pallas_src>

<mosaic_0001>
module attributes {stable_mosaic.version = 11 : i64} {
  func.func @kernel(%arg0: i32, %arg1: memref<16x256xf32, #tpu.memory_space<vmem>>, %arg2: memref<16x256xf32, #tpu.memory_space<vmem>>, %arg3: memref<256x128xbf16, #tpu.memory_space<vmem>>, %arg4: memref<1x128xf32, #tpu.memory_space<vmem>>, %arg5: memref<128x64xbf16, #tpu.memory_space<vmem>>, %arg6: memref<1x64xf32, #tpu.memory_space<vmem>>, %arg7: memref<64x128xbf16, #tpu.memory_space<vmem>>, %arg8: memref<1x128xf32, #tpu.memory_space<vmem>>, %arg9: memref<16x128xbf16, #tpu.memory_space<vmem>>, %arg10: memref<16x128xbf16, #tpu.memory_space<vmem>>) attributes {dimension_semantics = [#tpu.dimension_semantics<parallel>], iteration_bounds = array<i64: 1>, scalar_prefetch = 0 : i64, scratch_operands = 0 : i64, tpu.core_type = #tpu.core_type<tc>, window_params = [{transform_indices = @transform_0, window_bounds = array<i64: 16, 256>}, {transform_indices = @transform_1, window_bounds = array<i64: 16, 256>}, {pipeline_mode = #tpu.pipeline_mode<synchronous>, transform_indices = @transform_2, window_bounds = array<i64: 256, 128>}, {pipeline_mode = #tpu.pipeline_mode<synchronous>, transform_indices = @transform_3, window_bounds = array<i64: 1, 128>}, {pipeline_mode = #tpu.pipeline_mode<synchronous>, transform_indices = @transform_4, window_bounds = array<i64: 128, 64>}, {pipeline_mode = #tpu.pipeline_mode<synchronous>, transform_indices = @transform_5, window_bounds = array<i64: 1, 64>}, {pipeline_mode = #tpu.pipeline_mode<synchronous>, transform_indices = @transform_6, window_bounds = array<i64: 64, 128>}, {pipeline_mode = #tpu.pipeline_mode<synchronous>, transform_indices = @transform_7, window_bounds = array<i64: 1, 128>}, {transform_indices = @transform_8, window_bounds = array<i64: 16, 128>}, {transform_indices = @transform_9, window_bounds = array<i64: 16, 128>}]} {
    %c0 = arith.constant 0 : index
    %c0_0 = arith.constant 0 : index
    %0 = vector.load %arg3[%c0, %c0_0] : memref<256x128xbf16, #tpu.memory_space<vmem>>, vector<256x128xbf16>
    %c0_1 = arith.constant 0 : index
    %c0_2 = arith.constant 0 : index
    %1 = vector.load %arg5[%c0_1, %c0_2] : memref<128x64xbf16, #tpu.memory_space<vmem>>, vector<128x64xbf16>
    %c0_3 = arith.constant 0 : index
    %c0_4 = arith.constant 0 : index
    %2 = vector.load %arg7[%c0_3, %c0_4] : memref<64x128xbf16, #tpu.memory_space<vmem>>, vector<64x128xbf16>
    %c0_5 = arith.constant 0 : index
    %c0_6 = arith.constant 0 : index
    %3 = vector.load %arg4[%c0_5, %c0_6] : memref<1x128xf32, #tpu.memory_space<vmem>>, vector<1x128xf32>
    %c0_7 = arith.constant 0 : index
    %c0_8 = arith.constant 0 : index
    %4 = vector.load %arg6[%c0_7, %c0_8] : memref<1x64xf32, #tpu.memory_space<vmem>>, vector<1x64xf32>
    %c0_9 = arith.constant 0 : index
    %c0_10 = arith.constant 0 : index
    %5 = vector.load %arg8[%c0_9, %c0_10] : memref<1x128xf32, #tpu.memory_space<vmem>>, vector<1x128xf32>
    %c0_11 = arith.constant 0 : index
    %c0_12 = arith.constant 0 : index
    %6 = vector.load %arg1[%c0_11, %c0_12] : memref<16x256xf32, #tpu.memory_space<vmem>>, vector<16x256xf32>
    %7 = arith.truncf %6 : vector<16x256xf32> to vector<16x256xbf16>
    %cst = arith.constant dense<0.000000e+00> : vector<16x128xf32>
    %8 = tpu.matmul %7, %0, %cst {dimension_numbers = #tpu.dot_dimension_numbers<[1], [0], [0], [1], [0, 0, 1, 1], [], []>} : vector<16x256xbf16>, vector<256x128xbf16>, vector<16x128xf32> -> vector<16x128xf32>
    %9 = vector.broadcast %3 : vector<1x128xf32> to vector<16x128xf32>
    %10 = arith.addf %8, %9 : vector<16x128xf32>
    %cst_13 = arith.constant 0.000000e+00 : f32
    %11 = vector.broadcast %cst_13 : f32 to vector<16x128xf32>
    %12 = arith.maximumf %10, %11 : vector<16x128xf32>
    %13 = arith.truncf %12 : vector<16x128xf32> to vector<16x128xbf16>
    %cst_14 = arith.constant dense<0.000000e+00> : vector<16x64xf32>
    %14 = tpu.matmul %13, %1, %cst_14 {dimension_numbers = #tpu.dot_dimension_numbers<[1], [0], [0], [1], [0, 0, 1, 1], [], []>} : vector<16x128xbf16>, vector<128x64xbf16>, vector<16x64xf32> -> vector<16x64xf32>
    %15 = vector.broadcast %4 : vector<1x64xf32> to vector<16x64xf32>
    %16 = arith.addf %14, %15 : vector<16x64xf32>
    %cst_15 = arith.constant 0.000000e+00 : f32
    %17 = vector.broadcast %cst_15 : f32 to vector<16x64xf32>
    %18 = arith.maximumf %16, %17 : vector<16x64xf32>
    %19 = arith.truncf %18 : vector<16x64xf32> to vector<16x64xbf16>
    %cst_16 = arith.constant dense<0.000000e+00> : vector<16x128xf32>
    %20 = tpu.matmul %19, %2, %cst_16 {dimension_numbers = #tpu.dot_dimension_numbers<[1], [0], [0], [1], [0, 0, 1, 1], [], []>} : vector<16x64xbf16>, vector<64x128xbf16>, vector<16x128xf32> -> vector<16x128xf32>
    %21 = vector.broadcast %5 : vector<1x128xf32> to vector<16x128xf32>
    %22 = arith.addf %20, %21 : vector<16x128xf32>
    %23 = arith.truncf %22 : vector<16x128xf32> to vector<16x128xbf16>
    %c0_17 = arith.constant 0 : index
    %c0_18 = arith.constant 0 : index
    %24 = vector.load %arg9[%c0_17, %c0_18] : memref<16x128xbf16, #tpu.memory_space<vmem>>, vector<16x128xbf16>
    tpu.vector_store %arg9[%c0_17, %c0_18], %23 {strides = array<i32>} : memref<16x128xbf16, #tpu.memory_space<vmem>>, vector<16x128xbf16>,
    %c0_19 = arith.constant 0 : index
    %c0_20 = arith.constant 0 : index
    %25 = vector.load %arg2[%c0_19, %c0_20] : memref<16x256xf32, #tpu.memory_space<vmem>>, vector<16x256xf32>
    %26 = arith.truncf %25 : vector<16x256xf32> to vector<16x256xbf16>
    %cst_21 = arith.constant dense<0.000000e+00> : vector<16x128xf32>
    %27 = tpu.matmul %26, %0, %cst_21 {dimension_numbers = #tpu.dot_dimension_numbers<[1], [0], [0], [1], [0, 0, 1, 1], [], []>} : vector<16x256xbf16>, vector<256x128xbf16>, vector<16x128xf32> -> vector<16x128xf32>
    %28 = vector.broadcast %3 : vector<1x128xf32> to vector<16x128xf32>
    %29 = arith.addf %27, %28 : vector<16x128xf32>
    %cst_22 = arith.constant 0.000000e+00 : f32
    %30 = vector.broadcast %cst_22 : f32 to vector<16x128xf32>
    %31 = arith.maximumf %29, %30 : vector<16x128xf32>
    %32 = arith.truncf %31 : vector<16x128xf32> to vector<16x128xbf16>
    %cst_23 = arith.constant dense<0.000000e+00> : vector<16x64xf32>
    %33 = tpu.matmul %32, %1, %cst_23 {dimension_numbers = #tpu.dot_dimension_numbers<[1], [0], [0], [1], [0, 0, 1, 1], [], []>} : vector<16x128xbf16>, vector<128x64xbf16>, vector<16x64xf32> -> vector<16x64xf32>
    %34 = vector.broadcast %4 : vector<1x64xf32> to vector<16x64xf32>
    %35 = arith.addf %33, %34 : vector<16x64xf32>
    %cst_24 = arith.constant 0.000000e+00 : f32
    %36 = vector.broadcast %cst_24 : f32 to vector<16x64xf32>
    %37 = arith.maximumf %35, %36 : vector<16x64xf32>
    %38 = arith.truncf %37 : vector<16x64xf32> to vector<16x64xbf16>
    %cst_25 = arith.constant dense<0.000000e+00> : vector<16x128xf32>
    %39 = tpu.matmul %38, %2, %cst_25 {dimension_numbers = #tpu.dot_dimension_numbers<[1], [0], [0], [1], [0, 0, 1, 1], [], []>} : vector<16x64xbf16>, vector<64x128xbf16>, vector<16x128xf32> -> vector<16x128xf32>
    %40 = vector.broadcast %5 : vector<1x128xf32> to vector<16x128xf32>
    %41 = arith.addf %39, %40 : vector<16x128xf32>
    %42 = arith.truncf %41 : vector<16x128xf32> to vector<16x128xbf16>
    %c0_26 = arith.constant 0 : index
    %c0_27 = arith.constant 0 : index
    %43 = vector.load %arg10[%c0_26, %c0_27] : memref<16x128xbf16, #tpu.memory_space<vmem>>, vector<16x128xbf16>
    tpu.vector_store %arg10[%c0_26, %c0_27], %42 {strides = array<i32>} : memref<16x128xbf16, #tpu.memory_space<vmem>>, vector<16x128xbf16>,
    return
  }
  func.func @transform_0(%arg0: i32) -> (i32, i32) {
    %c0_i32 = arith.constant 0 : i32
    %c0_i32_0 = arith.constant 0 : i32
    return %arg0, %c0_i32 : i32, i32
  }
  func.func @transform_1(%arg0: i32) -> (i32, i32) {
    %c0_i32 = arith.constant 0 : i32
    %c0_i32_0 = arith.constant 0 : i32
    return %arg0, %c0_i32 : i32, i32
  }
  func.func @transform_2(%arg0: i32) -> (i32, i32) {
    %c0_i32 = arith.constant 0 : i32
    %c0_i32_0 = arith.constant 0 : i32
    %c0_i32_1 = arith.constant 0 : i32
    return %c0_i32, %c0_i32_0 : i32, i32
  }
  func.func @transform_3(%arg0: i32) -> (i32, i32) {
    %c0_i32 = arith.constant 0 : i32
    %c0_i32_0 = arith.constant 0 : i32
    %c0_i32_1 = arith.constant 0 : i32
    return %c0_i32, %c0_i32_0 : i32, i32
  }
  func.func @transform_4(%arg0: i32) -> (i32, i32) {
    %c0_i32 = arith.constant 0 : i32
    %c0_i32_0 = arith.constant 0 : i32
    %c0_i32_1 = arith.constant 0 : i32
    return %c0_i32, %c0_i32_0 : i32, i32
  }
  func.func @transform_5(%arg0: i32) -> (i32, i32) {
    %c0_i32 = arith.constant 0 : i32
    %c0_i32_0 = arith.constant 0 : i32
    %c0_i32_1 = arith.constant 0 : i32
    return %c0_i32, %c0_i32_0 : i32, i32
  }
  func.func @transform_6(%arg0: i32) -> (i32, i32) {
    %c0_i32 = arith.constant 0 : i32
    %c0_i32_0 = arith.constant 0 : i32
    %c0_i32_1 = arith.constant 0 : i32
    return %c0_i32, %c0_i32_0 : i32, i32
  }
  func.func @transform_7(%arg0: i32) -> (i32, i32) {
    %c0_i32 = arith.constant 0 : i32
    %c0_i32_0 = arith.constant 0 : i32
    %c0_i32_1 = arith.constant 0 : i32
    return %c0_i32, %c0_i32_0 : i32, i32
  }
  func.func @transform_8(%arg0: i32) -> (i32, i32) {
    %c0_i32 = arith.constant 0 : i32
    %c0_i32_0 = arith.constant 0 : i32
    return %arg0, %c0_i32 : i32, i32
  }
  func.func @transform_9(%arg0: i32) -> (i32, i32) {
    %c0_i32 = arith.constant 0 : i32
    %c0_i32_0 = arith.constant 0 : i32
    return %arg0, %c0_i32 : i32, i32
  }
}

</mosaic_0001>

<llo_original>
// kernel: siamese_forward.1
$region0: #{siamese_forward.1}
  #allocation0 [shape = 'u32[]', space=smem, size = 0x4, offset = 0x4, fixed_abs, tag = 'smem constant byte address 0x4 - core index']
  #allocation1 [shape = 'u32[72,128]{1,0:T(1,128)}', space=vmem, size = 0x9000, scoped, tag = 'internal scratch']
  %s0 = inlined_call_operand.vmem [shape: f32[16,256], index: 0, kind: input, shape index: {}]
  %s1 = inlined_call_operand.vmem [shape: f32[16,256], index: 1, kind: input, shape index: {}]
  %s2 = inlined_call_operand.vmem [shape: bf16[256,128], index: 2, kind: input, shape index: {}]
  %s3 = inlined_call_operand.vmem [shape: f32[1,128], index: 3, kind: input, shape index: {}]
  %s4 = inlined_call_operand.vmem [shape: bf16[128,64], index: 4, kind: input, shape index: {}]
  %s5 = inlined_call_operand.vmem [shape: f32[1,64], index: 5, kind: input, shape index: {}]
  %s6 = inlined_call_operand.vmem [shape: bf16[64,128], index: 6, kind: input, shape index: {}]
  %s7 = inlined_call_operand.vmem [shape: f32[1,128], index: 7, kind: input, shape index: {}]
  %s8 = inlined_call_operand.vmem [shape: bf16[16,128], index: 8, kind: output, shape index: {0}]
  %s9 = inlined_call_operand.vmem [shape: bf16[16,128], index: 9, kind: output, shape index: {1}]
  %10 = xla_tuple %s8, %s9
  %s11 = sld [smem:[#allocation0]]
  $region50: #{siamese_forward.1} parent=0
    _
  %s13 = ssub.s32 1, %s11
  %s14 = scalar_select 0, %s13, %s11
  // Predicated region
  $region2: #{siamese_forward.1} parent=0 // pred_check
    _
  $region3: #{siamese_forward.1} parent=0 // pred_check_branch
    %16 = sbr.rel (0) target = $region5
  $region4: #{siamese_forward.1} parent=0 // pred_region
    _
  $region5: #{siamese_forward.1} parent=0 // pred_fallthru
    _
  // Predicated region
  $region6: #{siamese_forward.1} parent=0 // pred_check
    _
  $region7: #{siamese_forward.1} parent=0 // pred_check_branch
    %18 = sbr.rel (0) target = $region9
  $region8: #{siamese_forward.1} parent=0 // pred_region
    _
  $region9: #{siamese_forward.1} parent=0 // pred_fallthru
    _
  // Predicated region
  $region10: #{siamese_forward.1} parent=0 // pred_check
    _
  $region11: #{siamese_forward.1} parent=0 // pred_check_branch
    %20 = sbr.rel (0) target = $region13
  $region12: #{siamese_forward.1} parent=0 // pred_region
    _
  $region13: #{siamese_forward.1} parent=0 // pred_fallthru
    _
  // Predicated region
  $region14: #{siamese_forward.1} parent=0 // pred_check
    _
  $region15: #{siamese_forward.1} parent=0 // pred_check_branch
    %22 = sbr.rel (0) target = $region17
  $region16: #{siamese_forward.1} parent=0 // pred_region
    _
  $region17: #{siamese_forward.1} parent=0 // pred_fallthru
    _
  // Predicated region
  $region18: #{siamese_forward.1} parent=0 // pred_check
    _
  $region19: #{siamese_forward.1} parent=0 // pred_check_branch
    %24 = sbr.rel (0) target = $region21
  $region20: #{siamese_forward.1} parent=0 // pred_region
    _
  $region21: #{siamese_forward.1} parent=0 // pred_fallthru
    _
  // Predicated region
  $region22: #{siamese_forward.1} parent=0 // pred_check
    _
  $region23: #{siamese_forward.1} parent=0 // pred_check_branch
    %26 = sbr.rel (0) target = $region25
  $region24: #{siamese_forward.1} parent=0 // pred_region
    _
  $region25: #{siamese_forward.1} parent=0 // pred_fallthru
    _
  // Predicated region
  $region26: #{siamese_forward.1} parent=0 // pred_check
    _
  $region27: #{siamese_forward.1} parent=0 // pred_check_branch
    %28 = sbr.rel (0) target = $region29
  $region28: #{siamese_forward.1} parent=0 // pred_region
    _
  $region29: #{siamese_forward.1} parent=0 // pred_fallthru
    _
  // Predicated region
  $region30: #{siamese_forward.1} parent=0 // pred_check
    _
  $region31: #{siamese_forward.1} parent=0 // pred_check_branch
    %30 = sbr.rel (0) target = $region33
  $region32: #{siamese_forward.1} parent=0 // pred_region
    _
  $region33: #{siamese_forward.1} parent=0 // pred_fallthru
    _
  %v32 = vld [vmem:[%s2] sm:$0xf]
  %v33 = vld [vmem:[%s2 + $0x4] sm:$0xf]
  %v34 = vld [vmem:[%s2 + $0x8] sm:$0xf]
  %v35 = vld [vmem:[%s2 + $0xc] sm:$0xf]
  %v36 = vld [vmem:[%s2 + $0x10] sm:$0xf]
  %v37 = vld [vmem:[%s2 + $0x14] sm:$0xf]
  %v38 = vld [vmem:[%s2 + $0x18] sm:$0xf]
  %v39 = vld [vmem:[%s2 + $0x1c] sm:$0xf]
  %v40 = vld [vmem:[%s2 + $0x20] sm:$0xf]
  %v41 = vld [vmem:[%s2 + $0x24] sm:$0xf]
  %v42 = vld [vmem:[%s2 + $0x28] sm:$0xf]
  %v43 = vld [vmem:[%s2 + $0x2c] sm:$0xf]
  %v44 = vld [vmem:[%s2 + $0x30] sm:$0xf]
  %v45 = vld [vmem:[%s2 + $0x34] sm:$0xf]
  %v46 = vld [vmem:[%s2 + $0x38] sm:$0xf]
  %v47 = vld [vmem:[%s2 + $0x3c] sm:$0xf]
  %v48 = vld [vmem:[%s2 + $0x40] sm:$0xf]
  %v49 = vld [vmem:[%s2 + $0x44] sm:$0xf]
  %v50 = vld [vmem:[%s2 + $0x48] sm:$0xf]
  %v51 = vld [vmem:[%s2 + $0x4c] sm:$0xf]
  %v52 = vld [vmem:[%s2 + $0x50] sm:$0xf]
  %v53 = vld [vmem:[%s2 + $0x54] sm:$0xf]
  %v54 = vld [vmem:[%s2 + $0x58] sm:$0xf]
  %v55 = vld [vmem:[%s2 + $0x5c] sm:$0xf]
  %v56 = vld [vmem:[%s2 + $0x60] sm:$0xf]
  %v57 = vld [vmem:[%s2 + $0x64] sm:$0xf]
  %v58 = vld [vmem:[%s2 + $0x68] sm:$0xf]
  %v59 = vld [vmem:[%s2 + $0x6c] sm:$0xf]
  %v60 = vld [vmem:[%s2 + $0x70] sm:$0xf]
  %v61 = vld [vmem:[%s2 + $0x74] sm:$0xf]
  %v62 = vld [vmem:[%s2 + $0x78] sm:$0xf]
  %v63 = vld [vmem:[%s2 + $0x7c] sm:$0xf]
  %v64 = vld [vmem:[%s4] sm:$0xf]
  %v65 = vld [vmem:[%s4 + $0x4] sm:$0xf]
  %v66 = vld [vmem:[%s4 + $0x8] sm:$0xf]
  %v67 = vld [vmem:[%s4 + $0xc] sm:$0xf]
  %v68 = vld [vmem:[%s4 + $0x10] sm:$0xf]
  %v69 = vld [vmem:[%s4 + $0x14] sm:$0xf]
  %v70 = vld [vmem:[%s4 + $0x18] sm:$0xf]
  %v71 = vld [vmem:[%s4 + $0x1c] sm:$0xf]
  %v72 = vld [vmem:[%s4 + $0x20] sm:$0xf]
  %v73 = vld [vmem:[%s4 + $0x24] sm:$0xf]
  %v74 = vld [vmem:[%s4 + $0x28] sm:$0xf]
  %v75 = vld [vmem:[%s4 + $0x2c] sm:$0xf]
  %v76 = vld [vmem:[%s4 + $0x30] sm:$0xf]
  %v77 = vld [vmem:[%s4 + $0x34] sm:$0xf]
  %v78 = vld [vmem:[%s4 + $0x38] sm:$0xf]
  %v79 = vld [vmem:[%s4 + $0x3c] sm:$0xf]
  %v80 = vld [vmem:[%s6] sm:$0xf]
  %v81 = vld [vmem:[%s6 + $0x4] sm:$0xf]
  %v82 = vld [vmem:[%s6 + $0x8] sm:$0xf]
  %v83 = vld [vmem:[%s6 + $0xc] sm:$0xf]
  %v84 = vld [vmem:[%s6 + $0x10] sm:$0xf]
  %v85 = vld [vmem:[%s6 + $0x14] sm:$0xf]
  %v86 = vld [vmem:[%s6 + $0x18] sm:$0xf]
  %v87 = vld [vmem:[%s6 + $0x1c] sm:$0xf]
  %v88 = vld [vmem:[%s3] sm:$0x1]
  %v89 = vld [vmem:[%s5] sm:$0x1]
  %v90 = vld [vmem:[%s7] sm:$0x1]
  %v91 = vld [vmem:[%s0] sm:$0xff]
  %v92 = vld [vmem:[%s0 + $0x8] sm:$0xff]
  %v93 = vld [vmem:[%s0 + $0x10] sm:$0xff]
  %v94 = vld [vmem:[%s0 + $0x18] sm:$0xff]
  %v95 = vpack.c.bf16 %v93, %v91
  %v96 = vpack.c.bf16 %v94, %v92
  %v98 = vperm.slane %v88, 0
  %v132 = vunpack.c.l.b16 %v32
  %v133 = vunpack.c.l.b16 %v33
  %v134 = vunpack.c.l.b16 %v34
  %v135 = vunpack.c.l.b16 %v35
  %v136 = vunpack.c.l.b16 %v36
  %v137 = vunpack.c.l.b16 %v37
  %v138 = vunpack.c.l.b16 %v38
  %v139 = vunpack.c.l.b16 %v39
  %v140 = vunpack.c.l.b16 %v40
  %v141 = vunpack.c.l.b16 %v41
  %v142 = vunpack.c.l.b16 %v42
  %v143 = vunpack.c.l.b16 %v43
  %v144 = vunpack.c.l.b16 %v44
  %v145 = vunpack.c.l.b16 %v45
  %v146 = vunpack.c.l.b16 %v46
  %v147 = vunpack.c.l.b16 %v47
  %v148 = vunpack.c.l.b16 %v48
  %v149 = vunpack.c.l.b16 %v49
  %v150 = vunpack.c.l.b16 %v50
  %v151 = vunpack.c.l.b16 %v51
  %v152 = vunpack.c.l.b16 %v52
  %v153 = vunpack.c.l.b16 %v53
  %v154 = vunpack.c.l.b16 %v54
  %v155 = vunpack.c.l.b16 %v55
  %v156 = vunpack.c.l.b16 %v56
  %v157 = vunpack.c.l.b16 %v57
  %v158 = vunpack.c.l.b16 %v58
  %v159 = vunpack.c.l.b16 %v59
  %v160 = vunpack.c.l.b16 %v60
  %v161 = vunpack.c.l.b16 %v61
  %v162 = vunpack.c.l.b16 %v62
  %v163 = vunpack.c.l.b16 %v63
  %v164 = vpack.c.b16 %v133, %v132
  %v165 = vpack.c.b16 %v135, %v134
  %v166 = vpack.c.b16 %v137, %v136
  %v167 = vpack.c.b16 %v139, %v138
  %v168 = vpack.c.b16 %v141, %v140
  %v169 = vpack.c.b16 %v143, %v142
  %v170 = vpack.c.b16 %v145, %v144
  %v171 = vpack.c.b16 %v147, %v146
  %v172 = vpack.c.b16 %v149, %v148
  %v173 = vpack.c.b16 %v151, %v150
  %v174 = vpack.c.b16 %v153, %v152
  %v175 = vpack.c.b16 %v155, %v154
  %v176 = vpack.c.b16 %v157, %v156
  %v177 = vpack.c.b16 %v159, %v158
  %v178 = vpack.c.b16 %v161, %v160
  %v179 = vpack.c.b16 %v163, %v162
  %196 = vmatpush.bf16.msra.mxu0 %v171
  %197 = vmatpush.bf16.msra.mxu0 %v170
  %198 = vmatpush.bf16.msra.mxu0 %v169
  %199 = vmatpush.bf16.msra.mxu0 %v168
  %200 = vmatpush.bf16.msra.mxu0 %v167
  %201 = vmatpush.bf16.msra.mxu0 %v166
  %202 = vmatpush.bf16.msra.mxu0 %v165
  %203 = vmatpush.bf16.msra.mxu0 %v164
  %204 = vmatmul.bf16.gmra.mxu0 %v95
  %v205 = vpop.f32.mrf.mxu0
  %v206 = vadd.f32 %v98, %v205
  %v207 = vpop.f32.mrf.mxu0
  %v208 = vadd.f32 %v98, %v207
  %209 = vdwg.mxu0
  %210 = vmatpush.bf16.msra.mxu0 %v179
  %211 = vmatpush.bf16.msra.mxu0 %v178
  %212 = vmatpush.bf16.msra.mxu0 %v177
  %213 = vmatpush.bf16.msra.mxu0 %v176
  %214 = vmatpush.bf16.msra.mxu0 %v175
  %215 = vmatpush.bf16.msra.mxu0 %v174
  %216 = vmatpush.bf16.msra.mxu0 %v173
  %217 = vmatpush.bf16.msra.mxu0 %v172
  %218 = vmatmul.bf16.gmra.mxu0 %v96
  %v219 = vpop.f32.mrf.mxu0
  %v220 = vadd.f32 %v206, %v219
  %v221 = vpop.f32.mrf.mxu0
  %v222 = vadd.f32 %v208, %v221
  %223 = vdwg.mxu0
  %v224 = vmax.f32 %v220, 0.0
  %v225 = vmax.f32 %v222, 0.0
  %v226 = vpack.c.bf16 %v225, %v224
  %v228 = vperm.slane %v89, 0
  %v246 = vunpack.c.l.b16 %v64
  %v247 = vunpack.c.l.b16 %v65
  %v248 = vunpack.c.l.b16 %v66
  %v249 = vunpack.c.l.b16 %v67
  %v250 = vunpack.c.l.b16 %v68
  %v251 = vunpack.c.l.b16 %v69
  %v252 = vunpack.c.l.b16 %v70
  %v253 = vunpack.c.l.b16 %v71
  %v254 = vunpack.c.l.b16 %v72
  %v255 = vunpack.c.l.b16 %v73
  %v256 = vunpack.c.l.b16 %v74
  %v257 = vunpack.c.l.b16 %v75
  %v258 = vunpack.c.l.b16 %v76
  %v259 = vunpack.c.l.b16 %v77
  %v260 = vunpack.c.l.b16 %v78
  %v261 = vunpack.c.l.b16 %v79
  %v262 = vpack.c.b16 %v247, %v246
  %v263 = vpack.c.b16 %v249, %v248
  %v264 = vpack.c.b16 %v251, %v250
  %v265 = vpack.c.b16 %v253, %v252
  %v266 = vpack.c.b16 %v255, %v254
  %v267 = vpack.c.b16 %v257, %v256
  %v268 = vpack.c.b16 %v259, %v258
  %v269 = vpack.c.b16 %v261, %v260
  %278 = vmatpush.bf16.msra.mxu0 %v269
  %279 = vmatpush.bf16.msra.mxu0 %v268
  %280 = vmatpush.bf16.msra.mxu0 %v267
  %281 = vmatpush.bf16.msra.mxu0 %v266
  %282 = vmatpush.bf16.msra.mxu0 %v265
  %283 = vmatpush.bf16.msra.mxu0 %v264
  %284 = vmatpush.bf16.msra.mxu0 %v263
  %285 = vmatpush.bf16.msra.mxu0 %v262
  %286 = vmatmul.bf16.gmra.mxu0 %v226
  %v287 = vpop.f32.mrf.mxu0
  %v288 = vadd.f32 %v228, %v287
  %v289 = vpop.f32.mrf.mxu0
  %v290 = vadd.f32 %v228, %v289
  %291 = vdwg.mxu0
  %v292 = vmax.f32 %v288, 0.0
  %v293 = vmax.f32 %v290, 0.0
  %v294 = vpack.c.bf16 %v293, %v292
  %v296 = vperm.slane %v90, 0
  %v306 = vunpack.c.l.b16 %v80
  %v307 = vunpack.c.l.b16 %v81
  %v308 = vunpack.c.l.b16 %v82
  %v309 = vunpack.c.l.b16 %v83
  %v310 = vunpack.c.l.b16 %v84
  %v311 = vunpack.c.l.b16 %v85
  %v312 = vunpack.c.l.b16 %v86
  %v313 = vunpack.c.l.b16 %v87
  %v314 = vpack.c.b16 %v307, %v306
  %v315 = vpack.c.b16 %v309, %v308
  %v316 = vpack.c.b16 %v311, %v310
  %v317 = vpack.c.b16 %v313, %v312
  %vm322 = vcmask 523264
  %v324 = vsel %vm322, %v294, 0
  %326 = vmatpush.bf16.msra.mxu0 0
  %327 = vmatpush.bf16.msra.mxu0 0
  %328 = vmatpush.bf16.msra.mxu0 0
  %329 = vmatpush.bf16.msra.mxu0 0
  %330 = vmatpush.bf16.msra.mxu0 %v317
  %331 = vmatpush.bf16.msra.mxu0 %v316
  %332 = vmatpush.bf16.msra.mxu0 %v315
  %333 = vmatpush.bf16.msra.mxu0 %v314
  %334 = vmatmul.bf16.gmra.mxu0 %v324
  %v335 = vpop.f32.mrf.mxu0
  %v336 = vadd.f32 %v296, %v335
  %v337 = vpop.f32.mrf.mxu0
  %v338 = vadd.f32 %v296, %v337
  %339 = vdwg.mxu0
  %v340 = vpack.c.bf16 %v336, %v336
  %v341 = vpack.c.bf16 %v338, %v338
  %342 = vst [vmem:[%s8] sm:$0xf] %v340
  %343 = vst [vmem:[%s8 + $0x4] sm:$0xf] %v341
  %v344 = vld [vmem:[%s1] sm:$0xff]
  %v345 = vld [vmem:[%s1 + $0x8] sm:$0xff]
  %v346 = vld [vmem:[%s1 + $0x10] sm:$0xff]
  %v347 = vld [vmem:[%s1 + $0x18] sm:$0xff]
  %v348 = vpack.c.bf16 %v346, %v344
  %v349 = vpack.c.bf16 %v347, %v345
  %350 = vmatpush.bf16.msra.mxu0 %v171
  %351 = vmatpush.bf16.msra.mxu0 %v170
  %352 = vmatpush.bf16.msra.mxu0 %v169
  %353 = vmatpush.bf16.msra.mxu0 %v168
  %354 = vmatpush.bf16.msra.mxu0 %v167
  %355 = vmatpush.bf16.msra.mxu0 %v166
  %356 = vmatpush.bf16.msra.mxu0 %v165
  %357 = vmatpush.bf16.msra.mxu0 %v164
  %358 = vmatmul.bf16.gmra.mxu0 %v348
  %v359 = vpop.f32.mrf.mxu0
  %v360 = vadd.f32 %v98, %v359
  %v361 = vpop.f32.mrf.mxu0
  %v362 = vadd.f32 %v98, %v361
  %363 = vdwg.mxu0
  %364 = vmatpush.bf16.msra.mxu0 %v179
  %365 = vmatpush.bf16.msra.mxu0 %v178
  %366 = vmatpush.bf16.msra.mxu0 %v177
  %367 = vmatpush.bf16.msra.mxu0 %v176
  %368 = vmatpush.bf16.msra.mxu0 %v175
  %369 = vmatpush.bf16.msra.mxu0 %v174
  %370 = vmatpush.bf16.msra.mxu0 %v173
  %371 = vmatpush.bf16.msra.mxu0 %v172
  %372 = vmatmul.bf16.gmra.mxu0 %v349
  %v373 = vpop.f32.mrf.mxu0
  %v374 = vadd.f32 %v360, %v373
  %v375 = vpop.f32.mrf.mxu0
  %v376 = vadd.f32 %v362, %v375
  %377 = vdwg.mxu0
  %v378 = vmax.f32 %v374, 0.0
  %v379 = vmax.f32 %v376, 0.0
  %v380 = vpack.c.bf16 %v379, %v378
  %381 = vmatpush.bf16.msra.mxu0 %v269
  %382 = vmatpush.bf16.msra.mxu0 %v268
  %383 = vmatpush.bf16.msra.mxu0 %v267
  %384 = vmatpush.bf16.msra.mxu0 %v266
  %385 = vmatpush.bf16.msra.mxu0 %v265
  %386 = vmatpush.bf16.msra.mxu0 %v264
  %387 = vmatpush.bf16.msra.mxu0 %v263
  %388 = vmatpush.bf16.msra.mxu0 %v262
  %389 = vmatmul.bf16.gmra.mxu0 %v380
  %v390 = vpop.f32.mrf.mxu0
  %v391 = vadd.f32 %v228, %v390
  %v392 = vpop.f32.mrf.mxu0
  %v393 = vadd.f32 %v228, %v392
  %394 = vdwg.mxu0
  %v395 = vmax.f32 %v391, 0.0
  %v396 = vmax.f32 %v393, 0.0
  %v397 = vpack.c.bf16 %v396, %v395
  %v399 = vsel %vm322, %v397, 0
  %401 = vmatpush.bf16.msra.mxu0 0
  %402 = vmatpush.bf16.msra.mxu0 0
  %403 = vmatpush.bf16.msra.mxu0 0
  %404 = vmatpush.bf16.msra.mxu0 0
  %405 = vmatpush.bf16.msra.mxu0 %v317
  %406 = vmatpush.bf16.msra.mxu0 %v316
  %407 = vmatpush.bf16.msra.mxu0 %v315
  %408 = vmatpush.bf16.msra.mxu0 %v314
  %409 = vmatmul.bf16.gmra.mxu0 %v399
  %v410 = vpop.f32.mrf.mxu0
  %v411 = vadd.f32 %v296, %v410
  %v412 = vpop.f32.mrf.mxu0
  %v413 = vadd.f32 %v296, %v412
  %414 = vdwg.mxu0
  %v415 = vpack.c.bf16 %v411, %v411
  %v416 = vpack.c.bf16 %v413, %v413
  %417 = vst [vmem:[%s9] sm:$0xf] %v415
  %418 = vst [vmem:[%s9 + $0x4] sm:$0xf] %v416
  // Predicated region
  $region34: #{siamese_forward.1} parent=0 // pred_check
    _
  $region35: #{siamese_forward.1} parent=0 // pred_check_branch
    %420 = sbr.rel (0) target = $region37
  $region36: #{siamese_forward.1} parent=0 // pred_region
    _
  $region37: #{siamese_forward.1} parent=0 // pred_fallthru
    _
  // Predicated region
  $region38: #{siamese_forward.1} parent=0 // pred_check
    _
  $region39: #{siamese_forward.1} parent=0 // pred_check_branch
    %422 = sbr.rel (0) target = $region41
  $region40: #{siamese_forward.1} parent=0 // pred_region
    _
  $region41: #{siamese_forward.1} parent=0 // pred_fallthru
    _
  // Predicated region
  $region42: #{siamese_forward.1} parent=0 // pred_check
    _
  $region43: #{siamese_forward.1} parent=0 // pred_check_branch
    %424 = sbr.rel (0) target = $region45
  $region44: #{siamese_forward.1} parent=0 // pred_region
    _
  $region45: #{siamese_forward.1} parent=0 // pred_fallthru
    _
  // Predicated region
  $region46: #{siamese_forward.1} parent=0 // pred_check
    _
  $region47: #{siamese_forward.1} parent=0 // pred_check_branch
    %426 = sbr.rel (0) target = $region49
  $region48: #{siamese_forward.1} parent=0 // pred_region
    _
  $region49: #{siamese_forward.1} parent=0 // pred_fallthru
    _

</llo_original>
